<compile_context>
chip_gen: v7x
topology: tpu7x:2x2x1
jax: 0.10.0
libtpu: 0.0.40
codegen_flags: <defaults>
</compile_context>

<pallas_src>
import math

import jax
import jax.numpy as jnp
from jax.experimental import pallas as pl
from jax.experimental.pallas import tpu as pltpu

_LANE = 128
_SUBLANE = 8
_LN2 = math.log(2.0)  # BCEWithLogits(x=0, target=t) == log(2) for any t


def _cdiv(a, b):
    return -(-a // b)


def _round_up(a, m):
    return _cdiv(a, m) * m


def _default_n_par():
    """2 only on multi-TensorCore chips (v7x); 1 on single-TC v5e/v6e (a fake 2-way
    'parallel' split is pure overhead on a mem-bound kernel)."""
    try:
        dev = jax.devices()[0]
        n = int(getattr(dev, "num_cores", 1) or 1)
        return max(1, min(2, n))
    except Exception:
        return 1


def _make_kernel(*, n_levels, batch, targets, inv_counts, pad_corr, n_chunks, for_real, for_G):
    """Static python flags / per-segment constants are baked into the closure."""

    def kernel(*refs):
        bce_refs = refs[:1 + n_levels]        # sigmoid + multilevel (resident, (B, rows, 128))
        xh_ref = refs[1 + n_levels]           # hinge chunk, (rh_tile, 128), streamed
        out_bce_ref = refs[2 + n_levels]      # (1, 1, B) per-sample BCE block
        out_h_ref = refs[3 + n_levels]        # (1, 1, 1) hinge-sum block
        acc_ref = refs[4 + n_levels]          # (8, 128) f32 hinge partial-sum scratch

        p = pl.program_id(0)                  # "parallel" axis (megacore split on v7x)
        j = pl.program_id(1)                  # "arbitrary" reduction axis (last)

        @pl.when(j == 0)
        def _init():
            out_bce_ref[...] = jnp.zeros_like(out_bce_ref)
            out_h_ref[...] = jnp.zeros_like(out_h_ref)
            acc_ref[...] = jnp.zeros_like(acc_ref)

        # --- small per-sample BCE terms: compute exactly once (program p==0, step 0) ---
        @pl.when(jnp.logical_and(p == 0, j == 0))
        def _bce_terms():
            # 2-D lane-dense accumulator: per-segment sublane reduces only; the single
            # cross-lane reduce happens once at the end.
            acc = jnp.zeros((batch, _LANE), jnp.float32)
            for ref, tgt, inv_n in zip(bce_refs, targets, inv_counts):
                x = ref[...].astype(jnp.float32)          # cast AFTER the load; f32 math
                # numerically stable BCEWithLogits(reduction='none')
                bce = jnp.maximum(x, 0.0) - x * tgt + jnp.log1p(jnp.exp(-jnp.abs(x)))
                acc = acc + jnp.sum(bce, axis=1) * inv_n  # (B, 128)
            # padded elements (x==0) each contributed exactly ln2*inv_n -> one constant.
            per_sample = jnp.sum(acc, axis=-1, keepdims=True) - pad_corr   # (B, 1)
            out_bce_ref[...] += per_sample.reshape(1, 1, batch)

        # --- hinge: streamed chunk, elementwise-accumulate into (8,128) VMEM scratch ---
        xh = xh_ref[...].astype(jnp.float32)
        if for_G:
            h = -xh                                # pad value 0.0 -> contributes 0
        elif for_real:
            h = jnp.maximum(1.0 - xh, 0.0)         # pad value +1.0 -> contributes 0
        else:
            h = jnp.maximum(1.0 + xh, 0.0)         # pad value -1.0 -> contributes 0
        acc_ref[...] += jnp.sum(h.reshape(-1, _SUBLANE, _LANE), axis=0)   # pure VPU adds

        # deferred cross-lane/sublane reduce: once per grid slice, on the last chunk
        @pl.when(j == n_chunks - 1)
        def _final():
            out_h_ref[...] = jnp.sum(acc_ref[...]).reshape(1, 1, 1)

    return kernel


def losses_list_forward(x_sigmoid, x_multilevel, x_hinge, *, for_real=True, for_G=False,
                        alpha_sig=1.0, alpha_ml=0.8, n_par=None, max_rows_per_chunk=4096):
    """Equivalent of losses_list('sigmoid+multilevel_sigmoid_s+hinge')(input, for_real, for_G)
    with input = [x_sigmoid (B,C), x_multilevel (list of (B,H,W)), x_hinge (B,C,H,W)]."""
    B = x_sigmoid.shape[0]
    n_levels = len(x_multilevel)
    if n_par is None:
        n_par = _default_n_par()
    n_par = max(1, int(n_par))

    # targets (for_G forces for_real=True, exactly like the torch module)
    t_real = True if for_G else for_real
    t_sig = float(alpha_sig) if t_real else 0.0
    t_ml = float(alpha_ml) if t_real else 0.0
    targets = (t_sig,) + (t_ml,) * n_levels

    # ---- small per-sample BCE inputs: native dtype, packed (B, rows, 128) -----------------
    bce_inputs, inv_counts = [], []
    pad_corr = 0.0
    for x in (x_sigmoid, *x_multilevel):
        flat = x.reshape(B, -1)                             # glue reshape, native dtype
        n = flat.shape[1]
        n_pad = _round_up(n, _LANE) - n
        if n_pad:
            flat = jnp.pad(flat, ((0, 0), (0, n_pad)))      # pad with 0 -> bce == ln2 (fixed)
        bce_inputs.append(flat.reshape(B, -1, _LANE))
        inv_counts.append(1.0 / n)
        pad_corr += n_pad * _LN2 / n                        # analytic padding correction

    # ---- hinge: flatten over ALL axes, pack lane/sublane dense, tile over the grid --------
    hinge_count = int(x_hinge.size)
    if for_G:
        pad_val = 0.0
    elif for_real:
        pad_val = 1.0
    else:
        pad_val = -1.0

    rows_h = _cdiv(hinge_count, _LANE)
    chunks_total = max(n_par, _cdiv(rows_h, max_rows_per_chunk))
    chunks_total = n_par * _cdiv(chunks_total, n_par)       # multiple of the parallel axis
    n_chunks_per_par = chunks_total // n_par
    rh_tile = _round_up(_cdiv(rows_h, chunks_total), _SUBLANE)   # keep sublane-aligned blocks
    rows_h_pad = rh_tile * chunks_total

    flat_h = x_hinge.reshape(-1)                            # native dtype on the wire
    n_pad_h = rows_h_pad * _LANE - hinge_count
    if n_pad_h:
        flat_h = jnp.pad(flat_h, (0, n_pad_h), constant_values=pad_val)
    xh = flat_h.reshape(rows_h_pad, _LANE)

    kernel = _make_kernel(n_levels=n_levels, batch=B, targets=targets,
                          inv_counts=tuple(inv_counts), pad_corr=float(pad_corr),
                          n_chunks=n_chunks_per_par, for_real=for_real, for_G=for_G)

    resident_bytes = sum(int(a.size) * a.dtype.itemsize for a in bce_inputs)
    tile_bytes = rh_tile * _LANE * x_hinge.dtype.itemsize

    bce_elems = sum(int(x.size) for x in (x_sigmoid, *x_multilevel))
    cost = pl.CostEstimate(
        flops=5 * bce_elems + 2 * hinge_count,
        transcendentals=2 * bce_elems,
        bytes_accessed=int(sum(int(x.size) * x.dtype.itemsize
                               for x in (x_sigmoid, *x_multilevel, x_hinge))))

    out_shape = (jax.ShapeDtypeStruct((n_par, 1, B), jnp.float32),
                 jax.ShapeDtypeStruct((n_par, 1, 1), jnp.float32))

    try:
        vmem_cap = int(pltpu.get_tpu_info().vmem_capacity_bytes)
    except Exception:
        vmem_cap = 64 << 20   # conservative (v7x per-TC)

    def _run(use_pipeline_mode):
        use_pm = bool(use_pipeline_mode) and hasattr(pl, "Buffered")

        # small BCE inputs: full-array blocks, constant index map -> fetched once, resident.
        # Single-buffer them (they never change) to free VMEM headroom for bigger hinge tiles.
        if use_pm:
            bce_specs = [pl.BlockSpec(a.shape, lambda p, j: (0, 0, 0),
                                      pipeline_mode=pl.Buffered(1)) for a in bce_inputs]
        else:
            bce_specs = [pl.BlockSpec(a.shape, lambda p, j: (0, 0, 0)) for a in bce_inputs]

        # hinge: streamed chunks, reduction axis last; chunk id = p * n_chunks_per_par + j.
        # With only 2-3 chunks per slice, a third buffer hides the prologue DMA latency.
        hinge_bufs = 3 if (use_pm and 2 <= n_chunks_per_par <= 3) else 2
        if use_pm and hinge_bufs != 2:
            xh_spec = pl.BlockSpec((rh_tile, _LANE),
                                   lambda p, j: (p * n_chunks_per_par + j, 0),
                                   pipeline_mode=pl.Buffered(hinge_bufs))
        else:
            xh_spec = pl.BlockSpec((rh_tile, _LANE),
                                   lambda p, j: (p * n_chunks_per_par + j, 0))

        out_specs = [pl.BlockSpec((1, 1, B), lambda p, j: (p, 0, 0)),
                     pl.BlockSpec((1, 1, 1), lambda p, j: (p, 0, 0))]

        resident_mult = 1 if use_pm else 2
        vmem_limit = resident_mult * resident_bytes + hinge_bufs * tile_bytes + (4 << 20)
        vmem_limit = int(min(max(vmem_limit, 16 << 20), max(vmem_cap - (4 << 20), 16 << 20)))

        return pl.pallas_call(
            kernel,
            out_shape=out_shape,
            grid_spec=pltpu.PrefetchScalarGridSpec(
                num_scalar_prefetch=0,
                grid=(n_par, n_chunks_per_par),
                in_specs=bce_specs + [xh_spec],
                out_specs=out_specs,
                scratch_shapes=[pltpu.VMEM((_SUBLANE, _LANE), jnp.float32)]),
            compiler_params=pltpu.CompilerParams(
                # TODO(synk): profile on v7x to confirm "parallel" shards the leading axis
                # across both TensorCores; if not, switch this axis to pltpu.CORE_PARALLEL.
                dimension_semantics=("parallel", "arbitrary"),
                vmem_limit_bytes=vmem_limit),
            cost_estimate=cost,
        )(*bce_inputs, xh)

    try:
        out_bce, out_h = _run(True)
    except Exception:
        # pipeline_mode / Buffered(1) not supported on this jax version -> default buffering
        out_bce, out_h = _run(False)

    # finalize (tiny): combine parallel partials, apply the single 1/N hinge scale,
    # broadcast the scalar hinge onto the per-sample (B, 1) loss (torch `loss += loss_`).
    bce_per_sample = out_bce.sum(axis=0).reshape(B, 1)
    hinge = out_h.sum() / float(hinge_count)
    return bce_per_sample + hinge


def _reference(x_sigmoid, x_multilevel, x_hinge, *, for_real=True, for_G=False,
               alpha_sig=1.0, alpha_ml=0.8):
    """Pure-JAX transcription of the torch module (for correctness checking)."""
    x_sigmoid = x_sigmoid.astype(jnp.float32)
    x_multilevel = [x.astype(jnp.float32) for x in x_multilevel]
    x_hinge = x_hinge.astype(jnp.float32)

    def bce(x, t):
        return jnp.maximum(x, 0.0) - x * t + jnp.log1p(jnp.exp(-jnp.abs(x)))

    t_real = True if for_G else for_real
    ts = alpha_sig if t_real else 0.0
    tm = alpha_ml if t_real else 0.0

    loss = jnp.mean(bce(x_sigmoid, ts), axis=1).reshape(-1, 1)
    for each in x_multilevel:
        loss = loss + jnp.mean(bce(each, tm), axis=(1, 2)).reshape(-1, 1)
    if for_G:
        h = -jnp.mean(x_hinge)
    elif for_real:
        h = jnp.mean(jnp.maximum(1.0 - x_hinge, 0.0))
    else:
        h = jnp.mean(jnp.maximum(1.0 + x_hinge, 0.0))
    return loss + h


if __name__ == "__main__":
    key = jax.random.PRNGKey(0)
    k1, k2, k3, k4 = jax.random.split(key, 4)

    B = 2
    x_sigmoid = jax.random.normal(k1, (B, 32), dtype=jnp.float32)        # sigmoid logits (B, C)
    x_multilevel = [
        jax.random.normal(k2, (B, 16, 16), dtype=jnp.float32),           # level-0 logits (B, H, W)
        jax.random.normal(k3, (B, 8, 8), dtype=jnp.float32),             # level-1 logits (B, H, W)
    ]
    x_hinge = jax.random.normal(k4, (B, 4, 16, 16), dtype=jnp.float32)   # hinge logits, NCHW

    ok = True
    for kwargs in ({"for_real": True, "for_G": False},    # D real branch
                   {"for_real": False, "for_G": False},   # D fake branch
                   {"for_real": True, "for_G": True}):    # G branch
        # small max_rows_per_chunk + forced n_par=2 so the toy shapes exercise multi-chunk
        # tiling, row padding, the Buffered(3) path and both "parallel" grid slices.
        out = losses_list_forward(x_sigmoid, x_multilevel, x_hinge,
                                  max_rows_per_chunk=4, n_par=2, **kwargs)
        out = jax.block_until_ready(out)
        ref = _reference(x_sigmoid, x_multilevel, x_hinge, **kwargs)
        if out.shape != (B, 1) or not bool(jnp.allclose(out, ref, atol=1e-5, rtol=1e-5)):
            ok = False

    # default config (auto n_par, large tiles) + native bf16 streaming of the hinge tensor;
    # f32 math happens in-kernel after the load.
    x_hinge_bf16 = x_hinge.astype(jnp.bfloat16)
    out = losses_list_forward(x_sigmoid, x_multilevel, x_hinge_bf16,
                              for_real=True, for_G=False)
    out = jax.block_until_ready(out)
    ref = _reference(x_sigmoid, x_multilevel, x_hinge_bf16, for_real=True, for_G=False)
    if out.shape != (B, 1) or not bool(jnp.allclose(out, ref, atol=1e-4, rtol=1e-4)):
        ok = False

    if ok:
        print("KERNEL_OK")
</pallas_src>

<mosaic_0001>
module attributes {stable_mosaic.version = 11 : i64} {
  func.func @kernel(%arg0: i32, %arg1: i32, %arg2: memref<2x1x128xf32, #tpu.memory_space<vmem>>, %arg3: memref<2x2x128xf32, #tpu.memory_space<vmem>>, %arg4: memref<2x1x128xf32, #tpu.memory_space<vmem>>, %arg5: memref<8x128xf32, #tpu.memory_space<vmem>>, %arg6: memref<1x1x2xf32, #tpu.memory_space<vmem>>, %arg7: memref<1x1x1xf32, #tpu.memory_space<vmem>>, %arg8: memref<8x128xf32, #tpu.memory_space<vmem>>) attributes {dimension_semantics = [#tpu.dimension_semantics<parallel>, #tpu.dimension_semantics<arbitrary>], iteration_bounds = array<i64: 2, 2>, scalar_prefetch = 0 : i64, scratch_operands = 1 : i64, tpu.core_type = #tpu.core_type<tc>, window_params = [{pipeline_mode = #tpu.pipeline_mode<synchronous>, transform_indices = @transform_0, window_bounds = array<i64: 2, 1, 128>}, {pipeline_mode = #tpu.pipeline_mode<synchronous>, transform_indices = @transform_1, window_bounds = array<i64: 2, 2, 128>}, {pipeline_mode = #tpu.pipeline_mode<synchronous>, transform_indices = @transform_2, window_bounds = array<i64: 2, 1, 128>}, {transform_indices = @transform_3, window_bounds = array<i64: 8, 128>}, {transform_indices = @transform_4, window_bounds = array<i64: 1, 1, 2>}, {transform_indices = @transform_5, window_bounds = array<i64: 1, 1, 1>}]} {
    %c0_i32 = arith.constant 0 : i32
    %0 = arith.cmpi eq, %arg1, %c0_i32 : i32
    %1 = arith.extui %0 : i1 to i32
    %c0_i32_0 = arith.constant 0 : i32
    %2 = arith.cmpi ne, %1, %c0_i32_0 : i32
    scf.if %2 {
      %cst_12 = arith.constant 0.000000e+00 : f32
      %21 = vector.broadcast %cst_12 : f32 to vector<1x1x2xf32>
      %c0_13 = arith.constant 0 : index
      %c0_14 = arith.constant 0 : index
      %c0_15 = arith.constant 0 : index
      %22 = vector.load %arg6[%c0_13, %c0_14, %c0_15] : memref<1x1x2xf32, #tpu.memory_space<vmem>>, vector<1x1x2xf32>
      tpu.vector_store %arg6[%c0_13, %c0_14, %c0_15], %21 {strides = array<i32>} : memref<1x1x2xf32, #tpu.memory_space<vmem>>, vector<1x1x2xf32>,
      %cst_16 = arith.constant 0.000000e+00 : f32
      %23 = vector.broadcast %cst_16 : f32 to vector<1x1x1xf32>
      %c0_17 = arith.constant 0 : index
      %c0_18 = arith.constant 0 : index
      %c0_19 = arith.constant 0 : index
      %24 = vector.load %arg7[%c0_17, %c0_18, %c0_19] : memref<1x1x1xf32, #tpu.memory_space<vmem>>, vector<1x1x1xf32>
      tpu.vector_store %arg7[%c0_17, %c0_18, %c0_19], %23 {strides = array<i32>} : memref<1x1x1xf32, #tpu.memory_space<vmem>>, vector<1x1x1xf32>,
      %cst_20 = arith.constant 0.000000e+00 : f32
      %25 = vector.broadcast %cst_20 : f32 to vector<8x128xf32>
      %c0_21 = arith.constant 0 : index
      %c0_22 = arith.constant 0 : index
      %26 = vector.load %arg8[%c0_21, %c0_22] : memref<8x128xf32, #tpu.memory_space<vmem>>, vector<8x128xf32>
      tpu.vector_store %arg8[%c0_21, %c0_22], %25 {strides = array<i32>} : memref<8x128xf32, #tpu.memory_space<vmem>>, vector<8x128xf32>,
    } else {
    }
    %c0_i32_1 = arith.constant 0 : i32
    %3 = arith.cmpi eq, %arg0, %c0_i32_1 : i32
    %c0_i32_2 = arith.constant 0 : i32
    %4 = arith.cmpi eq, %arg1, %c0_i32_2 : i32
    %5 = arith.andi %3, %4 : i1
    %6 = arith.extui %5 : i1 to i32
    %c0_i32_3 = arith.constant 0 : i32
    %7 = arith.cmpi ne, %6, %c0_i32_3 : i32
    scf.if %7 {
      %cst_12 = arith.constant 0.000000e+00 : f32
      %21 = vector.broadcast %cst_12 : f32 to vector<2x128xf32>
      %c0_13 = arith.constant 0 : index
      %c0_14 = arith.constant 0 : index
      %c0_15 = arith.constant 0 : index
      %22 = vector.load %arg2[%c0_13, %c0_14, %c0_15] : memref<2x1x128xf32, #tpu.memory_space<vmem>>, vector<2x1x128xf32>
      %cst_16 = arith.constant 0.000000e+00 : f32
      %23 = vector.broadcast %cst_16 : f32 to vector<2x1x128xf32>
      %24 = arith.maximumf %22, %23 : vector<2x1x128xf32>
      %cst_17 = arith.constant 1.000000e+00 : f32
      %25 = vector.broadcast %cst_17 : f32 to vector<2x1x128xf32>
      %26 = arith.mulf %22, %25 : vector<2x1x128xf32>
      %27 = arith.subf %24, %26 : vector<2x1x128xf32>
      %28 = math.absf %22 : vector<2x1x128xf32>
      %cst_18 = arith.constant 0.000000e+00 : f32
      %29 = vector.broadcast %cst_18 : f32 to vector<2x1x128xf32>
      %30 = arith.subf %29, %28 : vector<2x1x128xf32>
      %31 = math.exp %30 : vector<2x1x128xf32>
      %32 = math.log1p %31 : vector<2x1x128xf32>
      %33 = arith.addf %27, %32 : vector<2x1x128xf32>
      %cst_19 = arith.constant dense<0.000000e+00> : vector<2x128xf32>
      %34 = vector.multi_reduction <add>, %33, %cst_19 [1] : vector<2x1x128xf32> to vector<2x128xf32>
      %cst_20 = arith.constant 3.125000e-02 : f32
      %35 = vector.broadcast %cst_20 : f32 to vector<2x128xf32>
      %36 = arith.mulf %34, %35 : vector<2x128xf32>
      %37 = arith.addf %21, %36 : vector<2x128xf32>
      %c0_21 = arith.constant 0 : index
      %c0_22 = arith.constant 0 : index
      %c0_23 = arith.constant 0 : index
      %38 = vector.load %arg3[%c0_21, %c0_22, %c0_23] : memref<2x2x128xf32, #tpu.memory_space<vmem>>, vector<2x2x128xf32>
      %cst_24 = arith.constant 0.000000e+00 : f32
      %39 = vector.broadcast %cst_24 : f32 to vector<2x2x128xf32>
      %40 = arith.maximumf %38, %39 : vector<2x2x128xf32>
      %cst_25 = arith.constant 8.000000e-01 : f32
      %41 = vector.broadcast %cst_25 : f32 to vector<2x2x128xf32>
      %42 = arith.mulf %38, %41 : vector<2x2x128xf32>
      %43 = arith.subf %40, %42 : vector<2x2x128xf32>
      %44 = math.absf %38 : vector<2x2x128xf32>
      %cst_26 = arith.constant 0.000000e+00 : f32
      %45 = vector.broadcast %cst_26 : f32 to vector<2x2x128xf32>
      %46 = arith.subf %45, %44 : vector<2x2x128xf32>
      %47 = math.exp %46 : vector<2x2x128xf32>
      %48 = math.log1p %47 : vector<2x2x128xf32>
      %49 = arith.addf %43, %48 : vector<2x2x128xf32>
      %cst_27 = arith.constant dense<0.000000e+00> : vector<2x128xf32>
      %50 = vector.multi_reduction <add>, %49, %cst_27 [1] : vector<2x2x128xf32> to vector<2x128xf32>
      %cst_28 = arith.constant 3.906250e-03 : f32
      %51 = vector.broadcast %cst_28 : f32 to vector<2x128xf32>
      %52 = arith.mulf %50, %51 : vector<2x128xf32>
      %53 = arith.addf %37, %52 : vector<2x128xf32>
      %c0_29 = arith.constant 0 : index
      %c0_30 = arith.constant 0 : index
      %c0_31 = arith.constant 0 : index
      %54 = vector.load %arg4[%c0_29, %c0_30, %c0_31] : memref<2x1x128xf32, #tpu.memory_space<vmem>>, vector<2x1x128xf32>
      %cst_32 = arith.constant 0.000000e+00 : f32
      %55 = vector.broadcast %cst_32 : f32 to vector<2x1x128xf32>
      %56 = arith.maximumf %54, %55 : vector<2x1x128xf32>
      %cst_33 = arith.constant 8.000000e-01 : f32
      %57 = vector.broadcast %cst_33 : f32 to vector<2x1x128xf32>
      %58 = arith.mulf %54, %57 : vector<2x1x128xf32>
      %59 = arith.subf %56, %58 : vector<2x1x128xf32>
      %60 = math.absf %54 : vector<2x1x128xf32>
      %cst_34 = arith.constant 0.000000e+00 : f32
      %61 = vector.broadcast %cst_34 : f32 to vector<2x1x128xf32>
      %62 = arith.subf %61, %60 : vector<2x1x128xf32>
      %63 = math.exp %62 : vector<2x1x128xf32>
      %64 = math.log1p %63 : vector<2x1x128xf32>
      %65 = arith.addf %59, %64 : vector<2x1x128xf32>
      %cst_35 = arith.constant dense<0.000000e+00> : vector<2x128xf32>
      %66 = vector.multi_reduction <add>, %65, %cst_35 [1] : vector<2x1x128xf32> to vector<2x128xf32>
      %cst_36 = arith.constant 1.562500e-02 : f32
      %67 = vector.broadcast %cst_36 : f32 to vector<2x128xf32>
      %68 = arith.mulf %66, %67 : vector<2x128xf32>
      %69 = arith.addf %53, %68 : vector<2x128xf32>
      %cst_37 = arith.constant dense<0.000000e+00> : vector<2xf32>
      %70 = vector.multi_reduction <add>, %69, %cst_37 [1] : vector<2x128xf32> to vector<2xf32>
      %71 = vector.shape_cast %70 : vector<2xf32> to vector<2x1xf32>
      %cst_38 = arith.constant 2.77258873 : f32
      %72 = vector.broadcast %cst_38 : f32 to vector<2x1xf32>
      %73 = arith.subf %71, %72 : vector<2x1xf32>
      %c0_39 = arith.constant 0 : index
      %c0_40 = arith.constant 0 : index
      %c0_41 = arith.constant 0 : index
      %74 = vector.load %arg6[%c0_39, %c0_40, %c0_41] : memref<1x1x2xf32, #tpu.memory_space<vmem>>, vector<1x1x2xf32>
      %75 = vector.shape_cast %73 : vector<2x1xf32> to vector<1x1x2xf32>
      %76 = arith.addf %74, %75 : vector<1x1x2xf32>
      %c0_42 = arith.constant 0 : index
      %c0_43 = arith.constant 0 : index
      %c0_44 = arith.constant 0 : index
      %77 = vector.load %arg6[%c0_42, %c0_43, %c0_44] : memref<1x1x2xf32, #tpu.memory_space<vmem>>, vector<1x1x2xf32>
      tpu.vector_store %arg6[%c0_42, %c0_43, %c0_44], %76 {strides = array<i32>} : memref<1x1x2xf32, #tpu.memory_space<vmem>>, vector<1x1x2xf32>,
    } else {
    }
    %c0 = arith.constant 0 : index
    %c0_4 = arith.constant 0 : index
    %8 = vector.load %arg5[%c0, %c0_4] : memref<8x128xf32, #tpu.memory_space<vmem>>, vector<8x128xf32>
    %cst = arith.constant 1.000000e+00 : f32
    %9 = vector.broadcast %cst : f32 to vector<8x128xf32>
    %10 = arith.subf %9, %8 : vector<8x128xf32>
    %cst_5 = arith.constant 0.000000e+00 : f32
    %11 = vector.broadcast %cst_5 : f32 to vector<8x128xf32>
    %12 = arith.maximumf %10, %11 : vector<8x128xf32>
    %c0_6 = arith.constant 0 : index
    %c0_7 = arith.constant 0 : index
    %13 = vector.load %arg8[%c0_6, %c0_7] : memref<8x128xf32, #tpu.memory_space<vmem>>, vector<8x128xf32>
    %14 = vector.shape_cast %12 : vector<8x128xf32> to vector<1x8x128xf32>
    %cst_8 = arith.constant dense<0.000000e+00> : vector<8x128xf32>
    %15 = vector.multi_reduction <add>, %14, %cst_8 [0] : vector<1x8x128xf32> to vector<8x128xf32>
    %16 = arith.addf %13, %15 : vector<8x128xf32>
    %c0_9 = arith.constant 0 : index
    %c0_10 = arith.constant 0 : index
    %17 = vector.load %arg8[%c0_9, %c0_10] : memref<8x128xf32, #tpu.memory_space<vmem>>, vector<8x128xf32>
    tpu.vector_store %arg8[%c0_9, %c0_10], %16 {strides = array<i32>} : memref<8x128xf32, #tpu.memory_space<vmem>>, vector<8x128xf32>,
    %c1_i32 = arith.constant 1 : i32
    %18 = arith.cmpi eq, %arg1, %c1_i32 : i32
    %19 = arith.extui %18 : i1 to i32
    %c0_i32_11 = arith.constant 0 : i32
    %20 = arith.cmpi ne, %19, %c0_i32_11 : i32
    scf.if %20 {
      %c0_12 = arith.constant 0 : index
      %c0_13 = arith.constant 0 : index
      %21 = vector.load %arg8[%c0_12, %c0_13] : memref<8x128xf32, #tpu.memory_space<vmem>>, vector<8x128xf32>
      %22 = vector.shape_cast %21 : vector<8x128xf32> to vector<1x8x128xf32>
      %cst_14 = arith.constant dense<0.000000e+00> : vector<1xf32>
      %23 = vector.multi_reduction <add>, %22, %cst_14 [1, 2] : vector<1x8x128xf32> to vector<1xf32>
      %24 = vector.shape_cast %23 : vector<1xf32> to vector<1x1x1xf32>
      %25 = vector.extract %24[0, 0, 0] : f32 from vector<1x1x1xf32>
      %26 = vector.broadcast %25 : f32 to vector<1x1x1xf32>
      %c0_15 = arith.constant 0 : index
      %c0_16 = arith.constant 0 : index
      %c0_17 = arith.constant 0 : index
      %27 = vector.load %arg7[%c0_15, %c0_16, %c0_17] : memref<1x1x1xf32, #tpu.memory_space<vmem>>, vector<1x1x1xf32>
      tpu.vector_store %arg7[%c0_15, %c0_16, %c0_17], %26 {strides = array<i32>} : memref<1x1x1xf32, #tpu.memory_space<vmem>>, vector<1x1x1xf32>,
    } else {
    }
    return
  }
  func.func @transform_0(%arg0: i32, %arg1: i32) -> (i32, i32, i32) {
    %c0_i32 = arith.constant 0 : i32
    %c0_i32_0 = arith.constant 0 : i32
    %c0_i32_1 = arith.constant 0 : i32
    %c0_i32_2 = arith.constant 0 : i32
    return %c0_i32, %c0_i32_0, %c0_i32_1 : i32, i32, i32
  }
  func.func @transform_1(%arg0: i32, %arg1: i32) -> (i32, i32, i32) {
    %c0_i32 = arith.constant 0 : i32
    %c0_i32_0 = arith.constant 0 : i32
    %c0_i32_1 = arith.constant 0 : i32
    %c0_i32_2 = arith.constant 0 : i32
    return %c0_i32, %c0_i32_0, %c0_i32_1 : i32, i32, i32
  }
  func.func @transform_2(%arg0: i32, %arg1: i32) -> (i32, i32, i32) {
    %c0_i32 = arith.constant 0 : i32
    %c0_i32_0 = arith.constant 0 : i32
    %c0_i32_1 = arith.constant 0 : i32
    %c0_i32_2 = arith.constant 0 : i32
    return %c0_i32, %c0_i32_0, %c0_i32_1 : i32, i32, i32
  }
  func.func @transform_3(%arg0: i32, %arg1: i32) -> (i32, i32) {
    %c2_i32 = arith.constant 2 : i32
    %0 = arith.muli %arg0, %c2_i32 : i32
    %1 = arith.addi %0, %arg1 : i32
    %c0_i32 = arith.constant 0 : i32
    %c0_i32_0 = arith.constant 0 : i32
    return %1, %c0_i32 : i32, i32
  }
  func.func @transform_4(%arg0: i32, %arg1: i32) -> (i32, i32, i32) {
    %c0_i32 = arith.constant 0 : i32
    %c0_i32_0 = arith.constant 0 : i32
    %c0_i32_1 = arith.constant 0 : i32
    return %arg0, %c0_i32, %c0_i32_0 : i32, i32, i32
  }
  func.func @transform_5(%arg0: i32, %arg1: i32) -> (i32, i32, i32) {
    %c0_i32 = arith.constant 0 : i32
    %c0_i32_0 = arith.constant 0 : i32
    %c0_i32_1 = arith.constant 0 : i32
    return %arg0, %c0_i32, %c0_i32_0 : i32, i32, i32
  }
}

</mosaic_0001>

<llo_original>
// kernel: tpu_custom_call.1
$region0: #{tpu_custom_call.1}
  #allocation0 [shape = 'u32[]', space=smem, size = 0x4, offset = 0x4, fixed_abs, tag = 'smem constant byte address 0x4 - core index']
  #allocation1 [shape = 'u32[144,128]{1,0:T(1,128)}', space=vmem, size = 0x12000, scoped, tag = 'internal scratch']
  #allocation2 [shape = 'f32[8,128]{1,0:T(8,128)}', space=vmem, size = 0x1000, scoped, tag = 'scratch operand']
  %s0 = inlined_call_operand.hbm [shape: f32[2,1,128], index: 0, kind: input, shape index: {}]
  %s1 = inlined_call_operand.hbm [shape: f32[2,2,128], index: 1, kind: input, shape index: {}]
  %s2 = inlined_call_operand.vmem [shape: f32[2,1,128], index: 2, kind: input, shape index: {}]
  %s3 = inlined_call_operand.hbm [shape: f32[32,128], index: 3, kind: input, shape index: {}]
  %s4 = inlined_call_operand.hbm [shape: f32[2,1,2], index: 4, kind: output, shape index: {0}]
  %s5 = inlined_call_operand.vmem [shape: f32[2,1,1], index: 5, kind: output, shape index: {1}]
  %6 = xla_tuple %s4, %s5
  %s7 = sld [smem:[#allocation0]]
  $region81: #{tpu_custom_call.1} parent=0
    _
  %s9 = ssub.s32 1, %s7
  %s10 = scalar_select 0, %s9, %s7
  $region1: #{tpu_custom_call.1} parent=0
    #allocation3 [shape = 'u8[1024]{0}', space=vmem, size = 0x400, scoped, tag = 'input window, operand 0, single buffered']
    #allocation4 [shape = 's32[2]{0}', space=sflag, size = 0x8, scoped, tag = 'scoped memory for tpu_custom_call.1']
    #allocation5 [shape = 's32[2]{0}', space=sflag, size = 0x8, scoped, tag = 'scoped memory for tpu_custom_call.1']
    #allocation6 [shape = 'u8[2048]{0}', space=vmem, size = 0x800, scoped, tag = 'input window, operand 1, single buffered']
    #allocation7 [shape = 's32[1]{0}', space=sflag, size = 0x4, scoped, tag = 'scoped memory for tpu_custom_call.1']
    #allocation8 [shape = 'u8[8192]{0}', space=vmem, size = 0x2000, scoped, tag = 'input window, operand 3']
    #allocation9 [shape = 'u8[1024]{0}', space=vmem, size = 0x400, scoped, tag = 'output window, operand 0']
    %11 = vsyncpa [#allocation4], 0
    %12 = vsyncpa [#allocation7], 0
    %13 = vsyncpa [#allocation5], 0
    %s14 = scalar_lea.sflag [#allocation5], 1
    %15 = vsyncpa %s14, 0
    loop: start=0, step=1, limit=6
    $region2: #{tpu_custom_call.1} parent=1 // loop_pre_header
      _
    $region3: #{tpu_custom_call.1} parent=1 // loop_header
      %s17 = sphi 0, %s21
      %p18 = scmp.ge.s32.totalorder %s17, 6
      %s24 = sphi 0, %s36
      %s25 = sphi 0, %s32
      %s26 = sphi 0, %s24
      %s27 = sphi 0, %s25
      %s28 = sphi 0, %s26
      %s29 = sphi 0, %s27
      %s37 = sphi 0, %s37
      %s39 = sphi 0, %s37
      %s40 = sphi 0, %s39
      %s54 = sphi 0, %s40
      %s58 = sphi 0, %s58
      %s60 = sphi 0, %s58
      %s61 = sphi 0, %s60
      %s75 = sphi 0, %s61
      %s79 = sphi 0, %s79
      %s81 = sphi 0, %s79
      %s82 = sphi 0, %s81
      %s96 = sphi 0, %s82
      %s106 = sphi 0, %s108
      %s109 = sphi 0, %s106
      %s110 = sphi 0, %s109
      %s126 = sphi 0, %s110
      %s132 = sphi 0, %s134
      %s135 = sphi 0, %s132
      %s136 = sphi 0, %s135
      %s152 = sphi 0, %s136
      %s158 = sphi 0, %s160
      %s161 = sphi 0, %s158
      %s162 = sphi 0, %s161
      %s178 = sphi 0, %s162
    $region4: #{tpu_custom_call.1} parent=1 // loop_header_branch
      %20 = sbr.rel (%p18) target = $region8
    $region5: #{tpu_custom_call.1} parent=1 // loop_body
      %s22 = ssub.s32 %s17, 1
      %s23 = ssub.s32 %s17, 2
      %s30 = sadd.s32 1, %s25
      %p31 = scmp.ge.s32.totalorder %s30, 2
      %s32 = scalar_select %p31, 0, %s30
      %s33 = sadd.s32 1, %s24
      %s34 = scalar_select %p31, %s33, %s24
      %p35 = scmp.ge.s32.totalorder %s34, 2
      %s36 = scalar_select %p35, 0, %s34
      %s38 = sadd.s32 %s37, 1
      %p41 = scmp.eq.s32.totalorder %s17, 3
      %p42 = scmp.ne.s32.totalorder %s37, %s39
      %p43 = scmp.eq.s32.totalorder %s17, 0
      %p44 = por %p42, %p43
      %p45 = scmp.ne.s32.totalorder %s37, %s39
      %p46 = scmp.eq.s32.totalorder %s22, 3
      %p47 = por %p45, %p46
      %p48 = scmp.ne.s32.totalorder %s39, %s40
      %p49 = scmp.eq.s32.totalorder %s22, 0
      %p50 = por %p48, %p49
      %p51 = scmp.ne.s32.totalorder %s39, %s40
      %p52 = scmp.eq.s32.totalorder %s23, 3
      %p53 = por %p51, %p52
      %p55 = scmp.ne.s32.totalorder %s40, %s54
      %p56 = scmp.eq.s32.totalorder %s23, 0
      %p57 = por %p55, %p56
      %s59 = sadd.s32 %s58, 1
      %p62 = scmp.eq.s32.totalorder %s17, 3
      %p63 = scmp.ne.s32.totalorder %s58, %s60
      %p64 = scmp.eq.s32.totalorder %s17, 0
      %p65 = por %p63, %p64
      %p66 = scmp.ne.s32.totalorder %s58, %s60
      %p67 = scmp.eq.s32.totalorder %s22, 3
      %p68 = por %p66, %p67
      %p69 = scmp.ne.s32.totalorder %s60, %s61
      %p70 = scmp.eq.s32.totalorder %s22, 0
      %p71 = por %p69, %p70
      %p72 = scmp.ne.s32.totalorder %s60, %s61
      %p73 = scmp.eq.s32.totalorder %s23, 3
      %p74 = por %p72, %p73
      %p76 = scmp.ne.s32.totalorder %s61, %s75
      %p77 = scmp.eq.s32.totalorder %s23, 0
      %p78 = por %p76, %p77
      %s80 = sadd.s32 %s79, 1
      %p83 = scmp.eq.s32.totalorder %s17, 3
      %p84 = scmp.ne.s32.totalorder %s79, %s81
      %p85 = scmp.eq.s32.totalorder %s17, 0
      %p86 = por %p84, %p85
      %p87 = scmp.ne.s32.totalorder %s79, %s81
      %p88 = scmp.eq.s32.totalorder %s22, 3
      %p89 = por %p87, %p88
      %p90 = scmp.ne.s32.totalorder %s81, %s82
      %p91 = scmp.eq.s32.totalorder %s22, 0
      %p92 = por %p90, %p91
      %p93 = scmp.ne.s32.totalorder %s81, %s82
      %p94 = scmp.eq.s32.totalorder %s23, 3
      %p95 = por %p93, %p94
      %p97 = scmp.ne.s32.totalorder %s82, %s96
      %p98 = scmp.eq.s32.totalorder %s23, 0
      %p99 = por %p97, %p98
      %s100 = smul.u32 %s24, 2
      %s101 = sadd.s32 %s100, %s25
      %s102 = smul.u32 %s36, 2
      %s103 = sadd.s32 %s102, %s32
      %s104 = ssub.s32 %s101, %s103
      %p105 = scmp.eq.s32.totalorder %s104, 0
      %s107 = sadd.s32 %s106, 1
      %s108 = scalar_select %p105, %s106, %s107
      %p111 = pneg %p105
      %p112 = scmp.eq.s32.totalorder %s17, 3
      %p113 = por %p111, %p112
      %p114 = scmp.ne.s32.totalorder %s106, %s109
      %p115 = scmp.eq.s32.totalorder %s17, 0
      %p116 = por %p114, %p115
      %p117 = scmp.ne.s32.totalorder %s106, %s109
      %p118 = scmp.eq.s32.totalorder %s22, 3
      %p119 = por %p117, %p118
      %p120 = scmp.ne.s32.totalorder %s109, %s110
      %p121 = scmp.eq.s32.totalorder %s22, 0
      %p122 = por %p120, %p121
      %p123 = scmp.ne.s32.totalorder %s109, %s110
      %p124 = scmp.eq.s32.totalorder %s23, 3
      %p125 = por %p123, %p124
      %p127 = scmp.ne.s32.totalorder %s110, %s126
      %p128 = scmp.eq.s32.totalorder %s23, 0
      %p129 = por %p127, %p128
      %s130 = ssub.s32 %s24, %s36
      %p131 = scmp.eq.s32.totalorder %s130, 0
      %s133 = sadd.s32 %s132, 1
      %s134 = scalar_select %p131, %s132, %s133
      %p137 = pneg %p131
      %p138 = scmp.eq.s32.totalorder %s17, 3
      %p139 = por %p137, %p138
      %p140 = scmp.ne.s32.totalorder %s132, %s135
      %p141 = scmp.eq.s32.totalorder %s17, 0
      %p142 = por %p140, %p141
      %p143 = scmp.ne.s32.totalorder %s132, %s135
      %p144 = scmp.eq.s32.totalorder %s22, 3
      %p145 = por %p143, %p144
      %p146 = scmp.ne.s32.totalorder %s135, %s136
      %p147 = scmp.eq.s32.totalorder %s22, 0
      %p148 = por %p146, %p147
      %p149 = scmp.ne.s32.totalorder %s135, %s136
      %p150 = scmp.eq.s32.totalorder %s23, 3
      %p151 = por %p149, %p150
      %p153 = scmp.ne.s32.totalorder %s136, %s152
      %p154 = scmp.eq.s32.totalorder %s23, 0
      %p155 = por %p153, %p154
      %s156 = ssub.s32 %s24, %s36
      %p157 = scmp.eq.s32.totalorder %s156, 0
      %s159 = sadd.s32 %s158, 1
      %s160 = scalar_select %p157, %s158, %s159
      %p163 = pneg %p157
      %p164 = scmp.eq.s32.totalorder %s17, 3
      %p165 = por %p163, %p164
      %p166 = scmp.ne.s32.totalorder %s158, %s161
      %p167 = scmp.eq.s32.totalorder %s17, 0
      %p168 = por %p166, %p167
      %p169 = scmp.ne.s32.totalorder %s158, %s161
      %p170 = scmp.eq.s32.totalorder %s22, 3
      %p171 = por %p169, %p170
      %p172 = scmp.ne.s32.totalorder %s161, %s162
      %p173 = scmp.eq.s32.totalorder %s22, 0
      %p174 = por %p172, %p173
      %p175 = scmp.ne.s32.totalorder %s161, %s162
      %p176 = scmp.eq.s32.totalorder %s23, 3
      %p177 = por %p175, %p176
      %p179 = scmp.ne.s32.totalorder %s162, %s178
      %p180 = scmp.eq.s32.totalorder %s23, 0
      %p181 = por %p179, %p180
      %p182 = scmp.le.s32.totalorder 1, %s17
      %p183 = scmp.lt.s32.totalorder %s17, 5
      %p184 = pnand %p182, %p183
      %p185 = pneg %p184
      // Predicated region
      $region9: #{tpu_custom_call.1} parent=5 // pred_check
        _
      $region10: #{tpu_custom_call.1} parent=5 // pred_check_branch
        %187 = sbr.rel (%p184) target = $region12
      $region11: #{tpu_custom_call.1} parent=5 // pred_region
        %s188 = ssub.s32 %s17, 1
        // Predicated region
        $region13: #{tpu_custom_call.1} parent=11 // pred_check
          %p189 = pneg %p50
        $region14: #{tpu_custom_call.1} parent=11 // pred_check_branch
          %191 = sbr.rel (%p189) target = $region16
        $region15: #{tpu_custom_call.1} parent=11 // pred_region
          %s193 = ssub.s32 32, 32
          %194 = vsyncadd [#allocation4], %s193
          %s195 = sshll.u32 [#allocation3], 4
          %s196 = int_to_ptr.vmem [resolvable:$true] %s195
          %201 = dma.hbm_to_vmem [thread:$0]  %s0, 32, %s196, [#allocation4], 16, 16, 1
        $region16: #{tpu_custom_call.1} parent=11 // pred_fallthru
          _
        // Predicated region
        $region17: #{tpu_custom_call.1} parent=11 // pred_check
          %p202 = pneg %p71
        $region18: #{tpu_custom_call.1} parent=11 // pred_check_branch
          %204 = sbr.rel (%p202) target = $region20
        $region19: #{tpu_custom_call.1} parent=11 // pred_region
          %s206 = ssub.s32 64, 64
          %207 = vsyncadd [#allocation7], %s206
          %s208 = sshll.u32 [#allocation6], 4
          %s209 = int_to_ptr.vmem [resolvable:$true] %s208
          %214 = dma.hbm_to_vmem [thread:$0]  %s1, 64, %s209, [#allocation7], 32, 32, 2
        $region20: #{tpu_custom_call.1} parent=11 // pred_fallthru
          _
        // Predicated region
        $region21: #{tpu_custom_call.1} parent=11 // pred_check
          %p215 = pneg %p92
        $region22: #{tpu_custom_call.1} parent=11 // pred_check_branch
          %217 = sbr.rel (%p215) target = $region24
        $region23: #{tpu_custom_call.1} parent=11 // pred_region
          _
        $region24: #{tpu_custom_call.1} parent=11 // pred_fallthru
          _
      $region12: #{tpu_custom_call.1} parent=5 // pred_fallthru
        _
      %p218 = scmp.lt.s32.totalorder %s17, 4
      // Predicated region
      $region25: #{tpu_custom_call.1} parent=5 // pred_check
        %p219 = pneg %p218
      $region26: #{tpu_custom_call.1} parent=5 // pred_check_branch
        %221 = sbr.rel (%p219) target = $region28
      $region27: #{tpu_custom_call.1} parent=5 // pred_region
        // Predicated region
        $region29: #{tpu_custom_call.1} parent=27 // pred_check
          %p222 = pneg %p116
        $region30: #{tpu_custom_call.1} parent=27 // pred_check_branch
          %224 = sbr.rel (%p222) target = $region32
        $region31: #{tpu_custom_call.1} parent=27 // pred_region
          %s225 = sand.u32 %s17, 1
          %s226 = scalar_lea.sflag [#allocation4], %s225
          %s227 = sand.u32 %s106, 1
          %s228 = smul.addr %s227, 8
          %s229 = scalar_lea.vmem [#allocation8], %s228
          %s230 = smul.u32 %s24, 2
          %s231 = sadd.s32 %s230, %s25
          %s233 = ssub.s32 128, 128
          %234 = vsyncadd %s226, %s233
          %s235 = smul.addr %s231, 128
          %s236 = scalar_lea.hbm %s3, %s235
          %s238 = sshll.u32 %s229, 4
          %s239 = int_to_ptr.vmem [resolvable:$true] %s238
          %241 = dma.hbm_to_vmem [thread:$0]  %s236, 128, %s239, %s226
        $region32: #{tpu_custom_call.1} parent=27 // pred_fallthru
          _
      $region28: #{tpu_custom_call.1} parent=5 // pred_fallthru
        _
      %p242 = scmp.le.s32.totalorder 1, %s17
      %p243 = scmp.lt.s32.totalorder %s17, 5
      %p244 = pnand %p242, %p243
      %p245 = pneg %p244
      // Predicated region
      $region33: #{tpu_custom_call.1} parent=5 // pred_check
        _
      $region34: #{tpu_custom_call.1} parent=5 // pred_check_branch
        %247 = sbr.rel (%p244) target = $region36
      $region35: #{tpu_custom_call.1} parent=5 // pred_region
        %s248 = ssub.s32 %s17, 1
        // Predicated region
        $region37: #{tpu_custom_call.1} parent=35 // pred_check
          %p249 = pneg %p50
        $region38: #{tpu_custom_call.1} parent=35 // pred_check_branch
          %251 = sbr.rel (%p249) target = $region40
        $region39: #{tpu_custom_call.1} parent=35 // pred_region
          %252 = dma.done [#allocation4], 32
        $region40: #{tpu_custom_call.1} parent=35 // pred_fallthru
          _
        // Predicated region
        $region41: #{tpu_custom_call.1} parent=35 // pred_check
          %p253 = pneg %p71
        $region42: #{tpu_custom_call.1} parent=35 // pred_check_branch
          %255 = sbr.rel (%p253) target = $region44
        $region43: #{tpu_custom_call.1} parent=35 // pred_region
          %256 = dma.done [#allocation7], 64
        $region44: #{tpu_custom_call.1} parent=35 // pred_fallthru
          _
        %s257 = sand.u32 %s22, 1
        %s258 = scalar_lea.sflag [#allocation4], %s257
        %s259 = sand.u32 %s109, 1
        %s260 = smul.addr %s259, 8
        %s261 = scalar_lea.vmem [#allocation8], %s260
        // Predicated region
        $region45: #{tpu_custom_call.1} parent=35 // pred_check
          %p262 = pneg %p122
        $region46: #{tpu_custom_call.1} parent=35 // pred_check_branch
          %264 = sbr.rel (%p262) target = $region48
        $region47: #{tpu_custom_call.1} parent=35 // pred_region
          %265 = dma.done %s258, 128
        $region48: #{tpu_custom_call.1} parent=35 // pred_fallthru
          _
        %p266 = pneg %p50
        %p267 = pneg %p47
        %p268 = pneg %p71
        %p269 = pneg %p68
        %p270 = pneg %p92
        %p271 = pneg %p89
        %s272 = sand.u32 %s22, 1
        %s273 = scalar_lea.sflag [#allocation4], %s272
        %s274 = sand.u32 %s109, 1
        %s275 = smul.addr %s274, 8
        %s276 = scalar_lea.vmem [#allocation8], %s275
        %p277 = pneg %p122
        %p278 = pneg %p119
        %p279 = pneg %p148
        %p280 = pneg %p145
        %s281 = sand.u32 %s135, 1
        %s282 = scalar_lea.sflag [#allocation5], %s281
        %s283 = sand.u32 %s135, 1
        %s284 = scalar_lea.vmem [#allocation9], %s283
        %p285 = pneg %p174
        %p286 = pneg %p171
        %p287 = scmp.lt.s32.totalorder %s26, 1
        %s288 = scalar_select %p287, %s26, 1
        %s289 = scalar_lea.vmem %s5, %s288
        %s290 = smul.u32 %s26, 2
        %s291 = sadd.s32 %s290, %s27
        %p292 = scmp.lt.s32.totalorder %s26, 1
        %s293 = scalar_select %p292, %s26, 1
        %s294 = scalar_lea.vmem %s5, %s293
        %p295 = scmp.eq.s32.totalorder %s27, 0
        // Predicated region
        $region49: #{tpu_custom_call.1} parent=35 // pred_check
          %p296 = pneg %p295
        $region50: #{tpu_custom_call.1} parent=35 // pred_check_branch
          %298 = sbr.rel (%p296) target = $region52
        $region51: #{tpu_custom_call.1} parent=35 // pred_region
          %vm299 = vcmask 8192
          %300 = vst.msk [vmem:[%s284] sm:$0x1] %vm299, 0.0
          %vm301 = vcmask 0
          %302 = vst.msk [vmem:[%s294] sm:$0x1] %vm301, 0.0
          %303 = vst [vmem:[#allocation2] sm:$0xff] 0.0
        $region52: #{tpu_custom_call.1} parent=35 // pred_fallthru
          _
        %p304 = scmp.eq.s32.totalorder %s26, 0
        %p305 = pnand %p304, %p295
        %p306 = pneg %p305
        // Predicated region
        $region53: #{tpu_custom_call.1} parent=35 // pred_check
          _
        $region54: #{tpu_custom_call.1} parent=35 // pred_check_branch
          %308 = sbr.rel (%p305) target = $region56
        $region55: #{tpu_custom_call.1} parent=35 // pred_region
          %v309 = vld [vmem:[#allocation3] sm:$0x1]
          %v310 = vld [vmem:[#allocation3 + $0x1] sm:$0x1]
          %v311 = vmax.f32 %v309, 0.0
          %v312 = vmax.f32 %v310, 0.0
          %v313 = vsub.f32 %v311, %v309
          %v314 = vsub.f32 %v312, %v310
          %v315 = vand.u32 2147483647, %v309
          %v316 = vand.u32 2147483647, %v310
          %v317 = vsub.f32 0.0, %v315
          %v318 = vsub.f32 0.0, %v316
          %v319 = vmul.f32 %v317, 1.442695
          %v320 = vpow.pop %v319
          %v321 = vmul.f32 %v318, 1.442695
          %v322 = vpow.pop %v321
          %v323 = vadd.f32 %v320, 1.0
          %v324 = vlog2.pop %v323
          %v325 = vmul.f32 %v324, 0.6931472
          %v326 = vmul.f32 -0.5, %v320
          %v327 = vadd.f32 %v326, 1.0
          %v328 = vmul.f32 %v327, %v320
          %v329 = vand.u32 2147483647, %v320
          %vm330 = vcmp.lt.f32.partialorder %v329, 0.0004427343
          %v331 = vsel %vm330, %v328, %v325
          %v332 = vadd.f32 %v322, 1.0
          %v333 = vlog2.pop %v332
          %v334 = vmul.f32 %v333, 0.6931472
          %v335 = vmul.f32 -0.5, %v322
          %v336 = vadd.f32 %v335, 1.0
          %v337 = vmul.f32 %v336, %v322
          %v338 = vand.u32 2147483647, %v322
          %vm339 = vcmp.lt.f32.partialorder %v338, 0.0004427343
          %v340 = vsel %vm339, %v337, %v334
          %v341 = vadd.f32 %v313, %v331
          %v342 = vadd.f32 %v314, %v340
          %v343 = vadd.f32 %v341, 0.0
          %v344 = vadd.f32 %v342, 0.0
          %v345 = vmul.f32 %v343, 0.03125
          %v346 = vmul.f32 %v344, 0.03125
          %v347 = vadd.f32 %v345, 0.0
          %v348 = vadd.f32 %v346, 0.0
          %v349 = vld [vmem:[#allocation6] sm:$0x3]
          %v350 = vld [vmem:[#allocation6 + $0x2] sm:$0x3]
          %v351 = vmax.f32 %v349, 0.0
          %v352 = vmax.f32 %v350, 0.0
          %v353 = vmul.f32 %v349, 0.8
          %v354 = vmul.f32 %v350, 0.8
          %v355 = vsub.f32 %v351, %v353
          %v356 = vsub.f32 %v352, %v354
          %v357 = vand.u32 2147483647, %v349
          %v358 = vand.u32 2147483647, %v350
          %v359 = vsub.f32 0.0, %v357
          %v360 = vsub.f32 0.0, %v358
          %v361 = vmul.f32 %v359, 1.442695
          %v362 = vpow.pop %v361
          %v363 = vmul.f32 %v360, 1.442695
          %v364 = vpow.pop %v363
          %v365 = vadd.f32 %v362, 1.0
          %v366 = vlog2.pop %v365
          %v367 = vmul.f32 %v366, 0.6931472
          %v368 = vmul.f32 -0.5, %v362
          %v369 = vadd.f32 %v368, 1.0
          %v370 = vmul.f32 %v369, %v362
          %v371 = vand.u32 2147483647, %v362
          %vm372 = vcmp.lt.f32.partialorder %v371, 0.0004427343
          %v373 = vsel %vm372, %v370, %v367
          %v374 = vadd.f32 %v364, 1.0
          %v375 = vlog2.pop %v374
          %v376 = vmul.f32 %v375, 0.6931472
          %v377 = vmul.f32 -0.5, %v364
          %v378 = vadd.f32 %v377, 1.0
          %v379 = vmul.f32 %v378, %v364
          %v380 = vand.u32 2147483647, %v364
          %vm381 = vcmp.lt.f32.partialorder %v380, 0.0004427343
          %v382 = vsel %vm381, %v379, %v376
          %v383 = vadd.f32 %v355, %v373
          %v384 = vadd.f32 %v356, %v382
          %vm385 = vcmask 1041408
          %v386 = vsel %vm385, %v383, 0.0
          %v387 = vrot.slane %v386, 4
          %v388 = vadd.f32 %v386, %v387
          %v389 = vrot.slane %v388, 2
          %v390 = vadd.f32 %v388, %v389
          %v391 = vrot.slane %v390, 1
          %v392 = vadd.f32 %v390, %v391
          %v393 = vsel %vm385, %v384, 0.0
          %v394 = vrot.slane %v393, 4
          %v395 = vadd.f32 %v393, %v394
          %v396 = vrot.slane %v395, 2
          %v397 = vadd.f32 %v395, %v396
          %v398 = vrot.slane %v397, 1
          %v399 = vadd.f32 %v397, %v398
          %v400 = vmul.f32 %v392, 0.00390625
          %v401 = vmul.f32 %v399, 0.00390625
          %v402 = vadd.f32 %v347, %v400
          %v403 = vadd.f32 %v348, %v401
          %v404 = vld [vmem:[%s2] sm:$0x1]
          %v405 = vld [vmem:[%s2 + $0x1] sm:$0x1]
          %v406 = vmax.f32 %v404, 0.0
          %v407 = vmax.f32 %v405, 0.0
          %v408 = vmul.f32 %v404, 0.8
          %v409 = vmul.f32 %v405, 0.8
          %v410 = vsub.f32 %v406, %v408
          %v411 = vsub.f32 %v407, %v409
          %v412 = vand.u32 2147483647, %v404
          %v413 = vand.u32 2147483647, %v405
          %v414 = vsub.f32 0.0, %v412
          %v415 = vsub.f32 0.0, %v413
          %v416 = vmul.f32 %v414, 1.442695
          %v417 = vpow.pop %v416
          %v418 = vmul.f32 %v415, 1.442695
          %v419 = vpow.pop %v418
          %v420 = vadd.f32 %v417, 1.0
          %v421 = vlog2.pop %v420
          %v422 = vmul.f32 %v421, 0.6931472
          %v423 = vmul.f32 -0.5, %v417
          %v424 = vadd.f32 %v423, 1.0
          %v425 = vmul.f32 %v424, %v417
          %v426 = vand.u32 2147483647, %v417
          %vm427 = vcmp.lt.f32.partialorder %v426, 0.0004427343
          %v428 = vsel %vm427, %v425, %v422
          %v429 = vadd.f32 %v419, 1.0
          %v430 = vlog2.pop %v429
          %v431 = vmul.f32 %v430, 0.6931472
          %v432 = vmul.f32 -0.5, %v419
          %v433 = vadd.f32 %v432, 1.0
          %v434 = vmul.f32 %v433, %v419
          %v435 = vand.u32 2147483647, %v419
          %vm436 = vcmp.lt.f32.partialorder %v435, 0.0004427343
          %v437 = vsel %vm436, %v434, %v431
          %v438 = vadd.f32 %v410, %v428
          %v439 = vadd.f32 %v411, %v437
          %v440 = vadd.f32 %v438, 0.0
          %v441 = vadd.f32 %v439, 0.0
          %v442 = vmul.f32 %v440, 0.015625
          %v443 = vmul.f32 %v441, 0.015625
          %v444 = vadd.f32 %v402, %v442
          %v445 = vadd.f32 %v403, %v443
          %v448 = vcombine.low %v444, %v445
          %v450 = vunpack.c.l.s4 1966171168
          %v451 = vunpack.c.0.s8 %v450
          %v452 = vlaneseq
          %v453 = vshrl.u32 %v452, 7
          %v454 = vsub.s32 %v451, %v453
          %v455 = vrot.slane %v448, %v454
          %v457 = vunpack.c.l.s4 1966171168
          %v458 = vunpack.c.0.s8 %v457
          %v459 = vlaneseq
          %v460 = vshrl.u32 %v459, 7
          %v461 = vsub.s32 %v458, %v460
          %v462 = vrot.slane %v455, %v461
          %v464 = vsel %vm385, %v462, 0.0
          %465 = vadd.xlane.f32.xlu0 %v464
          %v466 = vpop.xlane.xlu0 %465
          %v467 = vsub.f32 %v466, 2.7725887
          %v468 = vld [vmem:[%s284] sm:$0x1]
          %v470 = vlaneseq
          %v471 = vshrl.u32 %v470, 7
          %v472 = vsub.s32 0, %v471
          %v473 = vrot.slane %v467, %v472
          %v474 = vlaneseq
          %v475 = vshrl.u32 %v474, 7
          %v476 = vsub.s32 1, %v475
          %v477 = vrot.slane %v467, %v476
          %v478 = vcombine.low %v473, %v477
          %v480 = vunpack.c.l.s4 1966171168
          %v481 = vunpack.c.0.s8 %v480
          %v482 = vlaneseq
          %v483 = vshrl.u32 %v482, 7
          %v484 = vsub.s32 %v481, %v483
          %v485 = vrot.slane %v478, %v484
          %v487 = vunpack.c.l.s4 1966171168
          %v488 = vunpack.c.0.s8 %v487
          %v489 = vlaneseq
          %v490 = vshrl.u32 %v489, 7
          %v491 = vsub.s32 %v488, %v490
          %v492 = vrot.slane %v485, %v491
          %493 = vset.pattern.permute.xlu0 0
          %494 = vperm.xlu0 %493, %v492
          %v495 = vpop.permute.xlu0 %494
          %v496 = vlaneseq
          %v497 = vand.u32 %v496, 127
          %v498 = vlaneseq
          %v499 = vshrl.u32 %v498, 7
          %v500 = vsub.s32 %v497, %v499
          %v501 = vrot.slane %v495, %v500
          %v503 = vunpack.c.l.s4 1966171168
          %v504 = vunpack.c.0.s8 %v503
          %v505 = vlaneseq
          %v506 = vshrl.u32 %v505, 7
          %v507 = vsub.s32 %v504, %v506
          %v508 = vrot.slane %v501, %v507
          %v510 = vunpack.c.l.s4 1966171168
          %v511 = vunpack.c.0.s8 %v510
          %v512 = vlaneseq
          %v513 = vshrl.u32 %v512, 7
          %v514 = vsub.s32 %v511, %v513
          %v515 = vrot.slane %v508, %v514
          %v517 = vadd.f32 %v468, %v515
          %vm518 = vcmask 8192
          %519 = vst.msk [vmem:[%s284] sm:$0x1] %vm518, %v517
        $region56: #{tpu_custom_call.1} parent=35 // pred_fallthru
          _
        %v520 = vld [vmem:[%s261] sm:$0xff]
        %v521 = vsub.f32 1.0, %v520
        %v522 = vmax.f32 %v521, 0.0
        %v523 = vld [vmem:[#allocation2] sm:$0xff]
        %v524 = vadd.f32 %v522, 0.0
        %v525 = vadd.f32 %v523, %v524
        %526 = vst [vmem:[#allocation2] sm:$0xff] %v525
        %p527 = scmp.eq.s32.totalorder %s27, 1
        // Predicated region
        $region57: #{tpu_custom_call.1} parent=35 // pred_check
          %p528 = pneg %p527
        $region58: #{tpu_custom_call.1} parent=35 // pred_check_branch
          %530 = sbr.rel (%p528) target = $region60
        $region59: #{tpu_custom_call.1} parent=35 // pred_region
          %v531 = vld [vmem:[#allocation2] sm:$0xff]
          %532 = vadd.xlane.f32.xlu0 %v531
          %v533 = vpop.xlane.xlu0 %532
          %v534 = vrot.slane %v533, 4
          %v535 = vadd.f32 %v533, %v534
          %v536 = vrot.slane %v535, 2
          %v537 = vadd.f32 %v535, %v536
          %v538 = vrot.slane %v537, 1
          %v539 = vadd.f32 %v537, %v538
          %s540 = vtos %v539
          %v541 = vstv %s540
          %vm542 = vcmask 0
          %543 = vst.msk [vmem:[%s294] sm:$0x1] %vm542, %v541
        $region60: #{tpu_custom_call.1} parent=35 // pred_fallthru
          _
        %s544 = sand.u32 %s135, 1
        %s545 = scalar_lea.sflag [#allocation5], %s544
        %s546 = sand.u32 %s135, 1
        %s547 = scalar_lea.vmem [#allocation9], %s546
        %p548 = scmp.lt.s32.totalorder %s26, 1
        %s549 = scalar_select %p548, %s26, 1
        %s550 = scalar_lea.vmem %s5, %s549
        // Predicated region
        $region61: #{tpu_custom_call.1} parent=35 // pred_check
          %p551 = pneg %p145
        $region62: #{tpu_custom_call.1} parent=35 // pred_check_branch
          %553 = sbr.rel (%p551) target = $region64
        $region63: #{tpu_custom_call.1} parent=35 // pred_region
          %s555 = ssub.s32 16, 16
          %556 = vsyncadd %s545, %s555
          %s557 = smul.addr %s26, 16
          %s558 = scalar_lea.hbm %s4, %s557
          %s560 = sshll.u32 %s547, 4
          %s561 = int_to_ptr.vmem [resolvable:$true] %s560
          %563 = dma.vmem_to_hbm [thread:$0]  %s561, 16, %s558, %s545
        $region64: #{tpu_custom_call.1} parent=35 // pred_fallthru
          _
        // Predicated region
        $region65: #{tpu_custom_call.1} parent=35 // pred_check
          %p564 = pneg %p171
        $region66: #{tpu_custom_call.1} parent=35 // pred_check_branch
          %566 = sbr.rel (%p564) target = $region68
        $region67: #{tpu_custom_call.1} parent=35 // pred_region
          _
        $region68: #{tpu_custom_call.1} parent=35 // pred_fallthru
          _
      $region36: #{tpu_custom_call.1} parent=5 // pred_fallthru
        _
      %p567 = scmp.le.s32.totalorder 2, %s17
      // Predicated region
      $region69: #{tpu_custom_call.1} parent=5 // pred_check
        %p568 = pneg %p567
      $region70: #{tpu_custom_call.1} parent=5 // pred_check_branch
        %570 = sbr.rel (%p568) target = $region72
      $region71: #{tpu_custom_call.1} parent=5 // pred_region
        %s571 = ssub.s32 %s17, 2
        // Predicated region
        $region73: #{tpu_custom_call.1} parent=71 // pred_check
          %p572 = pneg %p151
        $region74: #{tpu_custom_call.1} parent=71 // pred_check_branch
          %574 = sbr.rel (%p572) target = $region76
        $region75: #{tpu_custom_call.1} parent=71 // pred_region
          %s575 = sand.u32 %s136, 1
          %s576 = scalar_lea.sflag [#allocation5], %s575
          %s577 = sand.u32 %s136, 1
          %s578 = scalar_lea.vmem [#allocation9], %s577
          %579 = dma.done %s576, 16
        $region76: #{tpu_custom_call.1} parent=71 // pred_fallthru
          _
        // Predicated region
        $region77: #{tpu_custom_call.1} parent=71 // pred_check
          %p580 = pneg %p177
        $region78: #{tpu_custom_call.1} parent=71 // pred_check_branch
          %582 = sbr.rel (%p580) target = $region80
        $region79: #{tpu_custom_call.1} parent=71 // pred_region
          %p583 = scmp.lt.s32.totalorder %s28, 1
          %s584 = scalar_select %p583, %s28, 1
          %s585 = scalar_lea.vmem %s5, %s584
        $region80: #{tpu_custom_call.1} parent=71 // pred_fallthru
          _
      $region72: #{tpu_custom_call.1} parent=5 // pred_fallthru
        _
    $region6: #{tpu_custom_call.1} parent=1 // loop_footer
      %s21 = sadd.s32 1, %s17
    $region7: #{tpu_custom_call.1} parent=1 // loop_footer_branch
      %16 = sbr.rel target = $region3
    $region8: #{tpu_custom_call.1} parent=1 // loop_exit
      _
    %586 = vsyncpa [#allocation4], 1
    %s587 = scalar_lea.sflag [#allocation4], 1
    %588 = vsyncpa %s587, 1
    %589 = vsyncpa [#allocation7], 1
    %590 = vsyncpa [#allocation5], 1
    %s591 = scalar_lea.sflag [#allocation5], 1
    %592 = vsyncpa %s591, 1

</llo_original>
